<compile_context>
chip_gen: v6e
topology: v6e:2x2x1
jax: 0.10.0
libtpu: 0.0.40
codegen_flags: <defaults>
</compile_context>

<pallas_src>
import math

import jax
import jax.numpy as jnp
from jax.experimental import pallas as pl
from jax.experimental.pallas import tpu as pltpu


# ----------------------------------------------------------------------------
# glue: PyTorch-compatible bilinear interpolation matrices
# (F.interpolate, mode='bilinear', align_corners=None -> False semantics)
# ----------------------------------------------------------------------------
def _interp_matrix(out_size: int, in_size: int) -> jnp.ndarray:
    dst = jnp.arange(out_size, dtype=jnp.float32)
    src = (dst + 0.5) * (in_size / out_size) - 0.5
    src = jnp.maximum(src, 0.0)                      # PyTorch clamps negative coords
    i0 = jnp.clip(jnp.floor(src).astype(jnp.int32), 0, in_size - 1)
    i1 = jnp.minimum(i0 + 1, in_size - 1)
    frac = src - i0.astype(jnp.float32)
    rows = jnp.arange(out_size)
    m = jnp.zeros((out_size, in_size), jnp.float32)
    m = m.at[rows, i0].add(1.0 - frac)
    m = m.at[rows, i1].add(frac)
    return m


# ----------------------------------------------------------------------------
# kernel 1: 1x1 conv (bias=False) on the SMALL backbone map (conv-first reorder)
#   z[:, j-tile] = W @ x[:, j-tile]       W: (K, C), x: (C, Hin*Win)
#   bf16 MXU operands, f32 accumulation, bf16 output (halves the z round trip).
# ----------------------------------------------------------------------------
def _conv1x1_kernel(w_ref, x_ref, z_ref):
    z_ref[...] = jnp.dot(
        w_ref[...].astype(jnp.bfloat16),
        x_ref[...].astype(jnp.bfloat16),
        preferred_element_type=jnp.float32,
    ).astype(z_ref.dtype)


# ----------------------------------------------------------------------------
# kernel 2: separable bilinear resize of the K conv-output channels.
#   prologue (grid step 0 only): width pass at Hin resolution
#       zw[:, k*Wo:(k+1)*Wo] = z[k] @ rwt           (Hin, Wo) per channel
#   steady state (every row tile): ONE batched row-pass matmul
#       res = rh[row-tile] @ zw                      (tho, K*Wo)
#       y[k] = res[:, k*Wo:(k+1)*Wo]                 lane-aligned slices, no relayout
#   z / rwt use constant index_maps -> VMEM-resident across the grid.
# ----------------------------------------------------------------------------
def _make_interp_kernel(num_channels: int, wo: int):
    def kernel(rh_ref, z_ref, rwt_ref, y_ref, zw_ref):
        @pl.when(pl.program_id(0) == 0)
        def _prologue():
            rwt = rwt_ref[...]                        # (Win, Wo) bf16
            for k in range(num_channels):             # runs once, prologue only
                zw_ref[:, k * wo:(k + 1) * wo] = jnp.dot(
                    z_ref[k], rwt, preferred_element_type=jnp.float32
                ).astype(zw_ref.dtype)

        # batched row pass: (tho, Hin) @ (Hin, K*Wo) -> (tho, K*Wo), f32 acc
        res = jnp.dot(rh_ref[...], zw_ref[...],
                      preferred_element_type=jnp.float32)
        for k in range(num_channels):                 # 128-aligned lane slices
            y_ref[k] = res[:, k * wo:(k + 1) * wo].astype(y_ref.dtype)

    return kernel


# ----------------------------------------------------------------------------
# wrapper
# ----------------------------------------------------------------------------
def trans4pano_proj_after_forward(features, conv_w, observed_masks,
                                  out_size=(512, 1024),
                                  conv_tile_n=8192, interp_tile_h=64,
                                  out_dtype=jnp.float32):
    """features: (C=64, Hin, Win) float32 -- stands in for the Segformer output.
       conv_w  : (n_obj_classes, 64)     -- Conv2d(64, K, 1, bias=False) weight.
       out_dtype: jnp.bfloat16 halves the (dominant) semmap writeback on v5e.
    """
    C, Hin, Win = features.shape
    K, Cw = conv_w.shape
    assert Cw == C
    Ho, Wo = out_size                     # real module hardcodes (512, 1024)
    assert Wo % 128 == 0, "output width must be lane-aligned (module uses 1024)"

    # interp weights; 4x-scale weights are exact multiples of 2^-3 -> exact bf16
    rh = _interp_matrix(Ho, Hin).astype(jnp.bfloat16)        # (Ho, Hin)
    rwt = _interp_matrix(Wo, Win).T.astype(jnp.bfloat16)     # (Win, Wo)

    vmem_limit = 32 * 1024 * 1024         # fits worst-case footprint on all gens

    # --- stage 1: 1x1 conv on the small (Hin, Win) map --------------------
    hw = Hin * Win
    x_flat = features.reshape(C, hw)      # plain-JAX glue reshape (free in HBM)

    if hw % 128 == 0:
        tn = min(hw, max(128, (conv_tile_n // 128) * 128))
    else:
        tn = hw                           # full extent (always a legal block)

    z_flat = pl.pallas_call(
        _conv1x1_kernel,
        out_shape=jax.ShapeDtypeStruct((K, hw), jnp.bfloat16),
        grid_spec=pltpu.PrefetchScalarGridSpec(
            num_scalar_prefetch=0,
            grid=(pl.cdiv(hw, tn),),
            in_specs=[
                pl.BlockSpec((K, C), lambda j: (0, 0)),
                pl.BlockSpec((C, tn), lambda j: (0, j)),
            ],
            out_specs=pl.BlockSpec((K, tn), lambda j: (0, j)),
        ),
        compiler_params=pltpu.CompilerParams(
            dimension_semantics=("parallel",),
            vmem_limit_bytes=vmem_limit),
    )(conv_w, x_flat)

    z = z_flat.reshape(K, Hin, Win)       # tiny bf16 intermediate (K channels)

    # --- stage 2: width pass (prologue) + row pass, tiled over output rows -
    tho = math.gcd(Ho, interp_tile_h)
    if tho < 8:
        tho = Ho

    semmap = pl.pallas_call(
        _make_interp_kernel(K, Wo),
        out_shape=jax.ShapeDtypeStruct((K, Ho, Wo), out_dtype),
        grid_spec=pltpu.PrefetchScalarGridSpec(
            num_scalar_prefetch=0,
            grid=(Ho // tho,),
            in_specs=[
                pl.BlockSpec((tho, Hin), lambda i: (i, 0)),        # streams
                pl.BlockSpec((K, Hin, Win), lambda i: (0, 0, 0)),  # resident
                pl.BlockSpec((Win, Wo), lambda i: (0, 0)),         # resident
            ],
            out_specs=pl.BlockSpec((K, tho, Wo), lambda i: (0, i, 0)),
            scratch_shapes=[pltpu.VMEM((Hin, K * Wo), jnp.bfloat16)],
        ),
        compiler_params=pltpu.CompilerParams(
            # "arbitrary": the zw scratch is filled once at step 0 and reused
            # by all subsequent steps (sequential-grid accumulator pattern).
            dimension_semantics=("arbitrary",),
            vmem_limit_bytes=vmem_limit),
    )(rh, z, rwt)

    return semmap, observed_masks


# ----------------------------------------------------------------------------
# main
# ----------------------------------------------------------------------------
if __name__ == "__main__":
    key = jax.random.PRNGKey(0)
    k1, k2 = jax.random.split(key)

    C, Hin, Win = 64, 16, 32          # backbone feature map (64 channels per module)
    n_obj_classes = 13
    Ho, Wo = 64, 128                  # small stand-in for the hardcoded (512, 1024)

    features = jax.random.normal(k1, (C, Hin, Win), dtype=jnp.float32)
    # Conv2d(64, n_obj_classes, 1, bias=False) weight
    conv_w = jax.random.normal(k2, (n_obj_classes, C), dtype=jnp.float32) * (C ** -0.5)
    observed_masks = jnp.ones((Ho, Wo), dtype=jnp.bool_)

    semmap, masks = trans4pano_proj_after_forward(
        features, conv_w, observed_masks, out_size=(Ho, Wo),
        interp_tile_h=16)             # 4 row-tile grid steps at this small size
    jax.block_until_ready(semmap)
    jax.block_until_ready(masks)

    # pure-JAX f32 reference in the ORIGINAL module order (interp first, then
    # conv); validates the conv-first / width-first reorders.  Tolerance is
    # relaxed because the kernel computes with bf16 MXU operands.
    rh_ref = _interp_matrix(Ho, Hin)
    rwt_ref = _interp_matrix(Wo, Win).T
    ref_resized = jnp.einsum('oh,chw,wq->coq', rh_ref, features, rwt_ref)
    ref = jnp.einsum('kc,coq->koq', conv_w, ref_resized)

    assert semmap.shape == (n_obj_classes, Ho, Wo)
    assert masks.shape == observed_masks.shape
    assert jnp.allclose(semmap.astype(jnp.float32), ref, atol=5e-2, rtol=5e-2)

    print("KERNEL_OK")
</pallas_src>

<mosaic_0001>
module attributes {stable_mosaic.version = 11 : i64} {
  func.func @_conv1x1_kernel(%arg0: i32, %arg1: memref<13x64xf32, #tpu.memory_space<vmem>>, %arg2: memref<64x512xf32, #tpu.memory_space<vmem>>, %arg3: memref<13x512xbf16, #tpu.memory_space<vmem>>) attributes {dimension_semantics = [#tpu.dimension_semantics<parallel>], iteration_bounds = array<i64: 1>, scalar_prefetch = 0 : i64, scratch_operands = 0 : i64, tpu.core_type = #tpu.core_type<tc>, window_params = [{pipeline_mode = #tpu.pipeline_mode<synchronous>, transform_indices = @transform_0, window_bounds = array<i64: 13, 64>}, {transform_indices = @transform_1, window_bounds = array<i64: 64, 512>}, {transform_indices = @transform_2, window_bounds = array<i64: 13, 512>}]} {
    %c0 = arith.constant 0 : index
    %c0_0 = arith.constant 0 : index
    %0 = vector.load %arg1[%c0, %c0_0] : memref<13x64xf32, #tpu.memory_space<vmem>>, vector<13x64xf32>
    %1 = arith.truncf %0 : vector<13x64xf32> to vector<13x64xbf16>
    %c0_1 = arith.constant 0 : index
    %c0_2 = arith.constant 0 : index
    %2 = vector.load %arg2[%c0_1, %c0_2] : memref<64x512xf32, #tpu.memory_space<vmem>>, vector<64x512xf32>
    %3 = arith.truncf %2 : vector<64x512xf32> to vector<64x512xbf16>
    %cst = arith.constant dense<0.000000e+00> : vector<13x512xf32>
    %4 = tpu.matmul %1, %3, %cst {dimension_numbers = #tpu.dot_dimension_numbers<[1], [0], [0], [1], [0, 0, 1, 1], [], []>} : vector<13x64xbf16>, vector<64x512xbf16>, vector<13x512xf32> -> vector<13x512xf32>
    %5 = arith.truncf %4 : vector<13x512xf32> to vector<13x512xbf16>
    %c0_3 = arith.constant 0 : index
    %c0_4 = arith.constant 0 : index
    %6 = vector.load %arg3[%c0_3, %c0_4] : memref<13x512xbf16, #tpu.memory_space<vmem>>, vector<13x512xbf16>
    tpu.vector_store %arg3[%c0_3, %c0_4], %5 {strides = array<i32>} : memref<13x512xbf16, #tpu.memory_space<vmem>>, vector<13x512xbf16>,
    return
  }
  func.func @transform_0(%arg0: i32) -> (i32, i32) {
    %c0_i32 = arith.constant 0 : i32
    %c0_i32_0 = arith.constant 0 : i32
    %c0_i32_1 = arith.constant 0 : i32
    return %c0_i32, %c0_i32_0 : i32, i32
  }
  func.func @transform_1(%arg0: i32) -> (i32, i32) {
    %c0_i32 = arith.constant 0 : i32
    %c0_i32_0 = arith.constant 0 : i32
    return %c0_i32, %arg0 : i32, i32
  }
  func.func @transform_2(%arg0: i32) -> (i32, i32) {
    %c0_i32 = arith.constant 0 : i32
    %c0_i32_0 = arith.constant 0 : i32
    return %c0_i32, %arg0 : i32, i32
  }
}

</mosaic_0001>

<llo_original>
// kernel: tpu_custom_call.1
$region0: #{tpu_custom_call.1}
  #allocation0 [shape = 'u32[]', space=smem, size = 0x4, offset = 0x4, fixed_abs, tag = 'smem constant byte address 0x4 - core index']
  #allocation1 [shape = 'u32[144,128]{1,0:T(1,128)}', space=vmem, size = 0x12000, scoped, tag = 'internal scratch']
  %s0 = inlined_call_operand.hbm [shape: f32[13,64], index: 0, kind: input, shape index: {}]
  %s1 = inlined_call_operand.hbm [shape: f32[64,512], index: 1, kind: input, shape index: {}]
  %s2 = inlined_call_operand.hbm [shape: bf16[13,512], index: 2, kind: output, shape index: {}]
  %s3 = sld [smem:[#allocation0]]
  $region26: #{tpu_custom_call.1} parent=0
    _
  %s5 = ssub.s32 1, %s3
  %s6 = scalar_select 0, %s5, %s3
  $region1: #{tpu_custom_call.1} parent=0
    #allocation2 [shape = 'u8[8192]{0}', space=vmem, size = 0x2000, scoped, tag = 'input window, operand 0, single buffered']
    #allocation3 [shape = 's32[1]{0}', space=sflag, size = 0x4, scoped, tag = 'scoped memory for tpu_custom_call.1']
    #allocation4 [shape = 's32[1]{0}', space=sflag, size = 0x4, scoped, tag = 'scoped memory for tpu_custom_call.1']
    #allocation5 [shape = 'u8[131072]{0}', space=vmem, size = 0x20000, scoped, tag = 'input window, operand 1, single buffered']
    #allocation6 [shape = 's32[1]{0}', space=sflag, size = 0x4, scoped, tag = 'scoped memory for tpu_custom_call.1']
    #allocation7 [shape = 'u8[16384]{0}', space=vmem, size = 0x4000, scoped, tag = 'output window, operand 0, single buffered']
    %7 = vsyncpa [#allocation3], 0
    %8 = vsyncpa [#allocation6], 0
    %9 = vsyncpa [#allocation4], 0
    // Predicated region
    $region2: #{tpu_custom_call.1} parent=1 // pred_check
      _
    $region3: #{tpu_custom_call.1} parent=1 // pred_check_branch
      %11 = sbr.rel (0) target = $region5
    $region4: #{tpu_custom_call.1} parent=1 // pred_region
      %s13 = ssub.s32 256, 256
      %14 = vsyncadd [#allocation3], %s13
      %s15 = sshll.u32 [#allocation2], 4
      %s16 = int_to_ptr.vmem [resolvable:$true] %s15
      %21 = dma.hbm_to_vmem [thread:$0]  %s0, 256, %s16, [#allocation3], 128, 128, 8
    $region5: #{tpu_custom_call.1} parent=1 // pred_fallthru
      _
    // Predicated region
    $region6: #{tpu_custom_call.1} parent=1 // pred_check
      _
    $region7: #{tpu_custom_call.1} parent=1 // pred_check_branch
      %23 = sbr.rel (0) target = $region9
    $region8: #{tpu_custom_call.1} parent=1 // pred_region
      %s25 = ssub.s32 4096, 4096
      %26 = vsyncadd [#allocation6], %s25
      %s27 = sshll.u32 [#allocation5], 4
      %s28 = int_to_ptr.vmem [resolvable:$true] %s27
      %33 = dma.hbm_to_vmem [thread:$0]  %s1, 4096, %s28, [#allocation6], 512, 512, 32
    $region9: #{tpu_custom_call.1} parent=1 // pred_fallthru
      _
    // Predicated region
    $region10: #{tpu_custom_call.1} parent=1 // pred_check
      _
    $region11: #{tpu_custom_call.1} parent=1 // pred_check_branch
      %35 = sbr.rel (0) target = $region13
    $region12: #{tpu_custom_call.1} parent=1 // pred_region
      %36 = dma.done [#allocation3], 256
    $region13: #{tpu_custom_call.1} parent=1 // pred_fallthru
      _
    // Predicated region
    $region14: #{tpu_custom_call.1} parent=1 // pred_check
      _
    $region15: #{tpu_custom_call.1} parent=1 // pred_check_branch
      %38 = sbr.rel (0) target = $region17
    $region16: #{tpu_custom_call.1} parent=1 // pred_region
      %39 = dma.done [#allocation6], 4096
    $region17: #{tpu_custom_call.1} parent=1 // pred_fallthru
      _
    %v41 = vld [vmem:[#allocation2] sm:$0xff]
    %v42 = vld [vmem:[#allocation2 + $0x8] sm:$0x1f]
    %v43 = vpack.c.bf16 %v42, %v41
    %v44 = vld [vmem:[#allocation5] sm:$0xff]
    %v45 = vld [vmem:[#allocation5 + $0x8] sm:$0xff]
    %v46 = vld [vmem:[#allocation5 + $0x10] sm:$0xff]
    %v47 = vld [vmem:[#allocation5 + $0x18] sm:$0xff]
    %v48 = vld [vmem:[#allocation5 + $0x20] sm:$0xff]
    %v49 = vld [vmem:[#allocation5 + $0x28] sm:$0xff]
    %v50 = vld [vmem:[#allocation5 + $0x30] sm:$0xff]
    %v51 = vld [vmem:[#allocation5 + $0x38] sm:$0xff]
    %v52 = vld [vmem:[#allocation5 + $0x40] sm:$0xff]
    %v53 = vld [vmem:[#allocation5 + $0x48] sm:$0xff]
    %v54 = vld [vmem:[#allocation5 + $0x50] sm:$0xff]
    %v55 = vld [vmem:[#allocation5 + $0x58] sm:$0xff]
    %v56 = vld [vmem:[#allocation5 + $0x60] sm:$0xff]
    %v57 = vld [vmem:[#allocation5 + $0x68] sm:$0xff]
    %v58 = vld [vmem:[#allocation5 + $0x70] sm:$0xff]
    %v59 = vld [vmem:[#allocation5 + $0x78] sm:$0xff]
    %v60 = vld [vmem:[#allocation5 + $0x80] sm:$0xff]
    %v61 = vld [vmem:[#allocation5 + $0x88] sm:$0xff]
    %v62 = vld [vmem:[#allocation5 + $0x90] sm:$0xff]
    %v63 = vld [vmem:[#allocation5 + $0x98] sm:$0xff]
    %v64 = vld [vmem:[#allocation5 + $0xa0] sm:$0xff]
    %v65 = vld [vmem:[#allocation5 + $0xa8] sm:$0xff]
    %v66 = vld [vmem:[#allocation5 + $0xb0] sm:$0xff]
    %v67 = vld [vmem:[#allocation5 + $0xb8] sm:$0xff]
    %v68 = vld [vmem:[#allocation5 + $0xc0] sm:$0xff]
    %v69 = vld [vmem:[#allocation5 + $0xc8] sm:$0xff]
    %v70 = vld [vmem:[#allocation5 + $0xd0] sm:$0xff]
    %v71 = vld [vmem:[#allocation5 + $0xd8] sm:$0xff]
    %v72 = vld [vmem:[#allocation5 + $0xe0] sm:$0xff]
    %v73 = vld [vmem:[#allocation5 + $0xe8] sm:$0xff]
    %v74 = vld [vmem:[#allocation5 + $0xf0] sm:$0xff]
    %v75 = vld [vmem:[#allocation5 + $0xf8] sm:$0xff]
    %v76 = vpack.c.bf16 %v48, %v44
    %v77 = vpack.c.bf16 %v49, %v45
    %v78 = vpack.c.bf16 %v50, %v46
    %v79 = vpack.c.bf16 %v51, %v47
    %v80 = vpack.c.bf16 %v56, %v52
    %v81 = vpack.c.bf16 %v57, %v53
    %v82 = vpack.c.bf16 %v58, %v54
    %v83 = vpack.c.bf16 %v59, %v55
    %v84 = vpack.c.bf16 %v64, %v60
    %v85 = vpack.c.bf16 %v65, %v61
    %v86 = vpack.c.bf16 %v66, %v62
    %v87 = vpack.c.bf16 %v67, %v63
    %v88 = vpack.c.bf16 %v72, %v68
    %v89 = vpack.c.bf16 %v73, %v69
    %v90 = vpack.c.bf16 %v74, %v70
    %v91 = vpack.c.bf16 %v75, %v71
    %vm92 = vcmask 523264
    %v94 = vsel %vm92, %v43, 0
    %96 = vmatprep.subr.bf16.mxu0 0
    %97 = vmatpush1.bf16.msra.mxu0 0
    %98 = vmatprep.subr.bf16.mxu0 0
    %99 = vmatpush1.bf16.msra.mxu0 0
    %100 = vmatprep.subr.bf16.mxu0 0
    %101 = vmatpush1.bf16.msra.mxu0 0
    %102 = vmatprep.subr.bf16.mxu0 0
    %103 = vmatpush1.bf16.msra.mxu0 0
    %104 = vmatprep.subr.bf16.mxu0 %v89
    %105 = vmatpush1.bf16.msra.mxu0 %v88
    %106 = vmatprep.subr.bf16.mxu0 %v85
    %107 = vmatpush1.bf16.msra.mxu0 %v84
    %108 = vmatprep.subr.bf16.mxu0 %v81
    %109 = vmatpush1.bf16.msra.mxu0 %v80
    %110 = vmatprep.subr.bf16.mxu0 %v77
    %111 = vmatpush1.bf16.msra.mxu0 %v76
    %112 = vmatprep.subr.bf16.mxu0 0
    %113 = vmatpush2.bf16.msra.mxu0 0
    %114 = vmatprep.subr.bf16.mxu0 0
    %115 = vmatpush2.bf16.msra.mxu0 0
    %116 = vmatprep.subr.bf16.mxu0 0
    %117 = vmatpush2.bf16.msra.mxu0 0
    %118 = vmatprep.subr.bf16.mxu0 0
    %119 = vmatpush2.bf16.msra.mxu0 0
    %120 = vmatprep.subr.bf16.mxu0 0
    %121 = vmatpush2.bf16.msra.mxu0 0
    %122 = vmatprep.subr.bf16.mxu0 0
    %123 = vmatpush2.bf16.msra.mxu0 0
    %124 = vmatprep.subr.bf16.mxu0 0
    %125 = vmatpush2.bf16.msra.mxu0 0
    %126 = vmatprep.subr.bf16.mxu0 0
    %127 = vmatpush2.bf16.msra.mxu0 0
    %128 = vmatprep.mubr.bf16.mxu0 0
    %129 = vmatmul.mubr.bf16.gmra.mxu0 %v94
    %v130 = vpop.f32.mrf.mxu0
    %v131 = vadd.f32 0.0, %v130
    %v132 = vpop.f32.mrf.mxu0
    %v133 = vadd.f32 0.0, %v132
    %v134 = vpop.f32.mrf.mxu0
    %v135 = vadd.f32 0.0, %v134
    %v136 = vpop.f32.mrf.mxu0
    %v137 = vadd.f32 0.0, %v136
    %138 = vdwg.mxu0
    %139 = vmatprep.subr.bf16.mxu0 0
    %140 = vmatpush1.bf16.msra.mxu0 0
    %141 = vmatprep.subr.bf16.mxu0 0
    %142 = vmatpush1.bf16.msra.mxu0 0
    %143 = vmatprep.subr.bf16.mxu0 0
    %144 = vmatpush1.bf16.msra.mxu0 0
    %145 = vmatprep.subr.bf16.mxu0 0
    %146 = vmatpush1.bf16.msra.mxu0 0
    %147 = vmatprep.subr.bf16.mxu0 %v91
    %148 = vmatpush1.bf16.msra.mxu0 %v90
    %149 = vmatprep.subr.bf16.mxu0 %v87
    %150 = vmatpush1.bf16.msra.mxu0 %v86
    %151 = vmatprep.subr.bf16.mxu0 %v83
    %152 = vmatpush1.bf16.msra.mxu0 %v82
    %153 = vmatprep.subr.bf16.mxu0 %v79
    %154 = vmatpush1.bf16.msra.mxu0 %v78
    %155 = vmatprep.subr.bf16.mxu0 0
    %156 = vmatpush2.bf16.msra.mxu0 0
    %157 = vmatprep.subr.bf16.mxu0 0
    %158 = vmatpush2.bf16.msra.mxu0 0
    %159 = vmatprep.subr.bf16.mxu0 0
    %160 = vmatpush2.bf16.msra.mxu0 0
    %161 = vmatprep.subr.bf16.mxu0 0
    %162 = vmatpush2.bf16.msra.mxu0 0
    %163 = vmatprep.subr.bf16.mxu0 0
    %164 = vmatpush2.bf16.msra.mxu0 0
    %165 = vmatprep.subr.bf16.mxu0 0
    %166 = vmatpush2.bf16.msra.mxu0 0
    %167 = vmatprep.subr.bf16.mxu0 0
    %168 = vmatpush2.bf16.msra.mxu0 0
    %169 = vmatprep.subr.bf16.mxu0 0
    %170 = vmatpush2.bf16.msra.mxu0 0
    %171 = vmatprep.mubr.bf16.mxu0 0
    %172 = vmatmul.mubr.bf16.gmra.mxu0 %v94
    %v173 = vpop.f32.mrf.mxu0
    %v174 = vadd.f32 0.0, %v173
    %v175 = vpop.f32.mrf.mxu0
    %v176 = vadd.f32 0.0, %v175
    %v177 = vpop.f32.mrf.mxu0
    %v178 = vadd.f32 0.0, %v177
    %v179 = vpop.f32.mrf.mxu0
    %v180 = vadd.f32 0.0, %v179
    %181 = vdwg.mxu0
    %v182 = vpack.c.bf16 %v135, %v131
    %v183 = vpack.c.bf16 %v137, %v133
    %v184 = vpack.c.bf16 %v178, %v174
    %v185 = vpack.c.bf16 %v180, %v176
    %v190 = vunpack.c.l.b16 %v182
    %v191 = vunpack.c.l.b16 %v183
    %v192 = vunpack.c.l.b16 %v184
    %v193 = vunpack.c.l.b16 %v185
    %v194 = vunpack.c.h.b16 %v182
    %v195 = vunpack.c.h.b16 %v183
    %v196 = vunpack.c.h.b16 %v184
    %v197 = vunpack.c.h.b16 %v185
    %v198 = vpack.c.b16 %v191, %v190
    %v199 = vpack.c.b16 %v193, %v192
    %v200 = vpack.c.b16 %v195, %v194
    %v201 = vpack.c.b16 %v197, %v196
    %206 = vst [vmem:[#allocation7] sm:$0xff] %v198
    %207 = vst [vmem:[#allocation7 + $0x8] sm:$0xff] %v199
    %vm208 = vcmask 1042432
    %vm209 = vsmask.f32 2304
    %vm210 = vmand %vm208, %vm209
    %vm211 = vcmask 1046532
    %vm212 = vsmask.f32 6400
    %vm213 = vmand %vm211, %vm212
    %vm214 = vmor %vm213, %vm210
    %v215 = vld [vmem:[#allocation7 + $0x10] sm:$0x77]
    %v216 = vsel %vm214, %v200, %v215
    %217 = vst [vmem:[#allocation7 + $0x10] sm:$0x77] %v216
    %v218 = vld [vmem:[#allocation7 + $0x18] sm:$0x77]
    %v219 = vsel %vm214, %v201, %v218
    %220 = vst [vmem:[#allocation7 + $0x18] sm:$0x77] %v219
    // Predicated region
    $region18: #{tpu_custom_call.1} parent=1 // pred_check
      _
    $region19: #{tpu_custom_call.1} parent=1 // pred_check_branch
      %222 = sbr.rel (0) target = $region21
    $region20: #{tpu_custom_call.1} parent=1 // pred_region
      %s224 = ssub.s32 512, 512
      %225 = vsyncadd [#allocation4], %s224
      %s226 = sshll.u32 [#allocation7], 4
      %s227 = int_to_ptr.vmem [resolvable:$true] %s226
      %232 = dma.vmem_to_hbm [thread:$0]  %s227, 512, %s2, [#allocation4], 256, 256, 16
    $region21: #{tpu_custom_call.1} parent=1 // pred_fallthru
      _
    // Predicated region
    $region22: #{tpu_custom_call.1} parent=1 // pred_check
      _
    $region23: #{tpu_custom_call.1} parent=1 // pred_check_branch
      %234 = sbr.rel (0) target = $region25
    $region24: #{tpu_custom_call.1} parent=1 // pred_region
      %235 = dma.done [#allocation4], 512
    $region25: #{tpu_custom_call.1} parent=1 // pred_fallthru
      _
    %236 = vsyncpa [#allocation3], 1
    %237 = vsyncpa [#allocation6], 1
    %238 = vsyncpa [#allocation4], 1

</llo_original>
